<compile_context>
chip_gen: v7x
topology: tpu7x:2x2x1
jax: 0.10.0
libtpu: 0.0.40
codegen_flags: <defaults>
</compile_context>

<pallas_src>
import jax
import jax.numpy as jnp
from jax import lax
from jax.experimental import pallas as pl
from jax.experimental.pallas import tpu as pltpu


# ---------------------------------------------------------------------------
# Pallas kernel: one (TM, TN) tile of  y = x @ W^T + b
#   x_ref : (TM, K)   streamed activation tile
#   w_ref : (TN, K)   weight tile, native nn.Linear (out_features, in_features)
#   b_ref : (1,  TN)  bias tile (broadcast over rows)
#   o_ref : (TM, TN)  output tile
# ---------------------------------------------------------------------------
def _linear_kernel(x_ref, w_ref, b_ref, o_ref):
    acc = lax.dot_general(
        x_ref[...], w_ref[...],
        dimension_numbers=(((1,), (1,)), ((), ())),   # contract K with K
        preferred_element_type=jnp.float32,
    )
    o_ref[...] = (acc + b_ref[...].astype(jnp.float32)).astype(o_ref.dtype)


# ---------------------------------------------------------------------------
# Tile selection helpers
# ---------------------------------------------------------------------------
def _round_up(x, m):
    return ((x + m - 1) // m) * m


def _vmem_limit_bytes():
    """Generation-aware scoped-VMEM request: ~64 MiB on 128-MiB chips
    (v5e/v6e), ~32 MiB on v7x (64 MiB physical per TC)."""
    try:
        cap = int(pltpu.get_tpu_info().vmem_capacity_bytes)
    except Exception:
        cap = 64 * 1024 * 1024  # conservative fallback: assume v7x per-TC VMEM
    return max(32 * 1024 * 1024, min(cap // 2, 64 * 1024 * 1024))


def _choose_tiles(M, K, N, x_itemsize, w_itemsize, o_itemsize, budget):
    # --- N tile: keep the whole (N, K) weight VMEM-resident when small;
    # otherwise stream lane-dense (TN multiple of 128) weight tiles.
    w_bytes = N * K * w_itemsize
    if 2 * w_bytes <= budget // 4 or N <= 128:
        # TODO(synk): a huge input_dim with tiny N would additionally need a
        # K grid axis + f32 accumulator scratch; not needed for LR-sized heads.
        tn = N
    else:
        tn = 128
        while tn * 2 <= N and 2 * (tn * 2) * K * w_itemsize <= budget // 4:
            tn *= 2

    # --- M tile: fill remaining VMEM (double-buffered x + out tiles), but
    # guarantee >= 2 M-steps so both v7x TensorCores get work.
    if M < 16:
        tm = M                      # single block == full dim (always legal)
    else:
        avail = budget - 2 * min(N, tn) * K * w_itemsize
        per_row = 2 * (K * x_itemsize + tn * o_itemsize)   # double-buffered
        tm = max(8, avail // max(per_row, 1))
        tm = min(tm, 4096)                                 # diminishing returns
        tm = min(tm, _round_up(pl.cdiv(M, 2), 8))          # >= 2 steps (megacore)
        tm = max(8, (tm // 8) * 8)
    return int(tm), int(tn)


# ---------------------------------------------------------------------------
# Wrapper
# ---------------------------------------------------------------------------
def linear_forward(x2d, w, b):
    """x2d: (M, K); w: (N, K) PyTorch nn.Linear layout; b: (N,)."""
    M, K = x2d.shape
    N = w.shape[0]

    vmem_limit = _vmem_limit_bytes()
    budget = int(0.8 * vmem_limit)
    TM, TN = _choose_tiles(M, K, N, x2d.dtype.itemsize, w.dtype.itemsize,
                           x2d.dtype.itemsize, budget)

    b2 = b.reshape(1, N)            # metadata-only reshape, no copy

    grid = (pl.cdiv(M, TM), pl.cdiv(N, TN))

    flops = 2 * M * K * N
    bytes_accessed = (M * K * x2d.dtype.itemsize
                      + N * K * w.dtype.itemsize
                      + N * b.dtype.itemsize
                      + M * N * x2d.dtype.itemsize)

    return pl.pallas_call(
        _linear_kernel,
        out_shape=jax.ShapeDtypeStruct((M, N), x2d.dtype),
        grid_spec=pltpu.PrefetchScalarGridSpec(
            num_scalar_prefetch=0,
            grid=grid,
            in_specs=[
                pl.BlockSpec((TM, K), lambda i, j: (i, 0)),   # streamed x tiles
                pl.BlockSpec((TN, K), lambda i, j: (j, 0)),   # weight (resident when TN==N)
                pl.BlockSpec((1, TN), lambda i, j: (0, j)),   # bias
            ],
            out_specs=pl.BlockSpec((TM, TN), lambda i, j: (i, j)),
        ),
        compiler_params=pltpu.CompilerParams(
            dimension_semantics=("parallel", "parallel"),
            vmem_limit_bytes=vmem_limit,
        ),
        cost_estimate=pl.CostEstimate(
            flops=flops, transcendentals=0, bytes_accessed=bytes_accessed),
    )(x2d, w, b2)


def logistic_regression_forward(x, params):
    """Matches LogisticRegression.forward: self.fc(x) with x of shape
    (..., input_dim).  Leading dims are flattened into the M axis."""
    w, b = params["w"], params["b"]
    lead = x.shape[:-1]
    K = x.shape[-1]
    x2d = x.reshape(-1, K)
    y2d = linear_forward(x2d, w, b)
    return y2d.reshape(*lead, w.shape[0])


def init_params(key, input_dim, nr_classes):
    kw, kb = jax.random.split(key)
    # PyTorch nn.Linear layout: weight (nr_classes, input_dim), bias (nr_classes,)
    bound = 1.0 / (input_dim ** 0.5)
    w = jax.random.uniform(kw, (nr_classes, input_dim), jnp.float32,
                           minval=-bound, maxval=bound)
    b = jax.random.uniform(kb, (nr_classes,), jnp.float32,
                           minval=-bound, maxval=bound)
    return {"w": w, "b": b}


# ---------------------------------------------------------------------------
# Pure-JAX reference
# ---------------------------------------------------------------------------
def _ref_forward(x, params):
    return jnp.matmul(x, params["w"].T) + params["b"]


# ---------------------------------------------------------------------------
if __name__ == "__main__":
    key = jax.random.PRNGKey(0)
    kx, kp = jax.random.split(key)

    # Small shapes consistent with the module: batch=256, input_dim=32,
    # nr_classes=10.  The VMEM-budgeted/megacore TM selection yields TM=128,
    # i.e. a (2, 1) grid (2 parallel M steps), resident weight + bias.
    batch, input_dim, nr_classes = 256, 32, 10
    x = jax.random.normal(kx, (batch, input_dim), jnp.float32)
    params = init_params(kp, input_dim, nr_classes)

    out = linear_forward(x, params["w"], params["b"])
    out = jax.block_until_ready(out)

    ref = jax.block_until_ready(_ref_forward(x, params))
    assert out.shape == (batch, nr_classes)
    assert jnp.allclose(out, ref, atol=1e-4, rtol=1e-4), "mismatch vs reference"

    # Also exercise the generic (leading-dims) entry point.
    x3 = x.reshape(2, 128, input_dim)
    out3 = jax.block_until_ready(logistic_regression_forward(x3, params))
    assert jnp.allclose(out3.reshape(batch, nr_classes), ref,
                        atol=1e-4, rtol=1e-4), "mismatch (3D input)"

    # Non-multiple-of-tile batch (exercises Pallas partial-block masking,
    # no wrapper-side padding).
    x_odd = jax.random.normal(kx, (100, input_dim), jnp.float32)
    out_odd = jax.block_until_ready(
        linear_forward(x_odd, params["w"], params["b"]))
    ref_odd = jax.block_until_ready(_ref_forward(x_odd, params))
    assert jnp.allclose(out_odd, ref_odd, atol=1e-4, rtol=1e-4), \
        "mismatch (ragged batch)"

    print("KERNEL_OK")
</pallas_src>

<mosaic_0001>
module attributes {stable_mosaic.version = 11 : i64} {
  func.func @_linear_kernel(%arg0: i32, %arg1: i32, %arg2: memref<128x32xf32, #tpu.memory_space<vmem>>, %arg3: memref<10x32xf32, #tpu.memory_space<vmem>>, %arg4: memref<1x10xf32, #tpu.memory_space<vmem>>, %arg5: memref<128x10xf32, #tpu.memory_space<vmem>>) attributes {dimension_semantics = [#tpu.dimension_semantics<parallel>, #tpu.dimension_semantics<parallel>], iteration_bounds = array<i64: 2, 1>, scalar_prefetch = 0 : i64, scratch_operands = 0 : i64, tpu.core_type = #tpu.core_type<tc>, window_params = [{transform_indices = @transform_0, window_bounds = array<i64: 128, 32>}, {transform_indices = @transform_1, window_bounds = array<i64: 10, 32>}, {transform_indices = @transform_2, window_bounds = array<i64: 1, 10>}, {transform_indices = @transform_3, window_bounds = array<i64: 128, 10>}]} {
    %c0 = arith.constant 0 : index
    %c0_0 = arith.constant 0 : index
    %0 = vector.load %arg2[%c0, %c0_0] : memref<128x32xf32, #tpu.memory_space<vmem>>, vector<128x32xf32>
    %c0_1 = arith.constant 0 : index
    %c0_2 = arith.constant 0 : index
    %1 = vector.load %arg3[%c0_1, %c0_2] : memref<10x32xf32, #tpu.memory_space<vmem>>, vector<10x32xf32>
    %cst = arith.constant dense<0.000000e+00> : vector<128x10xf32>
    %2 = tpu.matmul %0, %1, %cst {dimension_numbers = #tpu.dot_dimension_numbers<[1], [1], [0], [0], [0, 0, 1, 0], [], []>} : vector<128x32xf32>, vector<10x32xf32>, vector<128x10xf32> -> vector<128x10xf32>
    %c0_3 = arith.constant 0 : index
    %c0_4 = arith.constant 0 : index
    %3 = vector.load %arg4[%c0_3, %c0_4] : memref<1x10xf32, #tpu.memory_space<vmem>>, vector<1x10xf32>
    %4 = vector.broadcast %3 : vector<1x10xf32> to vector<128x10xf32>
    %5 = arith.addf %2, %4 : vector<128x10xf32>
    %c0_5 = arith.constant 0 : index
    %c0_6 = arith.constant 0 : index
    %6 = vector.load %arg5[%c0_5, %c0_6] : memref<128x10xf32, #tpu.memory_space<vmem>>, vector<128x10xf32>
    tpu.vector_store %arg5[%c0_5, %c0_6], %5 {strides = array<i32>} : memref<128x10xf32, #tpu.memory_space<vmem>>, vector<128x10xf32>,
    return
  }
  func.func @transform_0(%arg0: i32, %arg1: i32) -> (i32, i32) {
    %c0_i32 = arith.constant 0 : i32
    %c0_i32_0 = arith.constant 0 : i32
    return %arg0, %c0_i32 : i32, i32
  }
  func.func @transform_1(%arg0: i32, %arg1: i32) -> (i32, i32) {
    %c0_i32 = arith.constant 0 : i32
    %c0_i32_0 = arith.constant 0 : i32
    return %arg1, %c0_i32 : i32, i32
  }
  func.func @transform_2(%arg0: i32, %arg1: i32) -> (i32, i32) {
    %c0_i32 = arith.constant 0 : i32
    %c0_i32_0 = arith.constant 0 : i32
    return %c0_i32, %arg1 : i32, i32
  }
  func.func @transform_3(%arg0: i32, %arg1: i32) -> (i32, i32) {
    %c0_i32 = arith.constant 0 : i32
    return %arg0, %arg1 : i32, i32
  }
}

</mosaic_0001>

<llo_original>
// kernel: tpu_custom_call.1
$region0: #{tpu_custom_call.1}
  #allocation0 [shape = 'u32[]', space=smem, size = 0x4, offset = 0x4, fixed_abs, tag = 'smem constant byte address 0x4 - core index']
  #allocation1 [shape = 'u32[144,128]{1,0:T(1,128)}', space=vmem, size = 0x12000, scoped, tag = 'internal scratch']
  %s0 = inlined_call_operand.vmem [shape: f32[256,32], index: 0, kind: input, shape index: {}]
  %s1 = inlined_call_operand.vmem [shape: f32[10,32], index: 1, kind: input, shape index: {}]
  %s2 = inlined_call_operand.vmem [shape: f32[1,10], index: 2, kind: input, shape index: {}]
  %s3 = inlined_call_operand.vmem [shape: f32[256,10], index: 3, kind: output, shape index: {}]
  %s4 = sld [smem:[#allocation0]]
  $region45: #{tpu_custom_call.1} parent=0
    _
  %s6 = ssub.s32 1, %s4
  %s7 = scalar_select 0, %s6, %s4
  loop: start=0, step=1, limit=4
  $region2: #{tpu_custom_call.1} parent=0 // loop_pre_header
    _
  $region3: #{tpu_custom_call.1} parent=0 // loop_header
    %s9 = sphi 0, %s13
    %p10 = scmp.ge.s32.totalorder %s9, 4
    %s16 = sphi 0, %s28
    %s17 = sphi 0, %s24
    %s18 = sphi 0, %s16
    %s19 = sphi 0, %s17
    %s20 = sphi 0, %s18
    %s21 = sphi 0, %s19
    %s31 = sphi 0, %s33
    %s34 = sphi 0, %s31
    %s35 = sphi 0, %s34
    %s51 = sphi 0, %s35
    %s57 = sphi 0, %s59
    %s60 = sphi 0, %s57
    %s61 = sphi 0, %s60
    %s77 = sphi 0, %s61
    %s83 = sphi 0, %s85
    %s86 = sphi 0, %s83
    %s87 = sphi 0, %s86
    %s103 = sphi 0, %s87
    %s111 = sphi 0, %s113
    %s114 = sphi 0, %s111
    %s115 = sphi 0, %s114
    %s131 = sphi 0, %s115
  $region4: #{tpu_custom_call.1} parent=0 // loop_header_branch
    %12 = sbr.rel (%p10) target = $region8
  $region5: #{tpu_custom_call.1} parent=0 // loop_body
    %s14 = ssub.s32 %s9, 1
    %s15 = ssub.s32 %s9, 2
    %s22 = sadd.s32 1, %s17
    %p23 = scmp.ge.s32.totalorder %s22, 1
    %s24 = scalar_select %p23, 0, %s22
    %s25 = sadd.s32 1, %s16
    %s26 = scalar_select %p23, %s25, %s16
    %p27 = scmp.ge.s32.totalorder %s26, 2
    %s28 = scalar_select %p27, 0, %s26
    %s29 = ssub.s32 %s16, %s28
    %p30 = scmp.eq.s32.totalorder %s29, 0
    %s32 = sadd.s32 %s31, 1
    %s33 = scalar_select %p30, %s31, %s32
    %p36 = pneg %p30
    %p37 = scmp.eq.s32.totalorder %s9, 1
    %p38 = por %p36, %p37
    %p39 = scmp.ne.s32.totalorder %s31, %s34
    %p40 = scmp.eq.s32.totalorder %s9, 0
    %p41 = por %p39, %p40
    %p42 = scmp.ne.s32.totalorder %s31, %s34
    %p43 = scmp.eq.s32.totalorder %s14, 1
    %p44 = por %p42, %p43
    %p45 = scmp.ne.s32.totalorder %s34, %s35
    %p46 = scmp.eq.s32.totalorder %s14, 0
    %p47 = por %p45, %p46
    %p48 = scmp.ne.s32.totalorder %s34, %s35
    %p49 = scmp.eq.s32.totalorder %s15, 1
    %p50 = por %p48, %p49
    %p52 = scmp.ne.s32.totalorder %s35, %s51
    %p53 = scmp.eq.s32.totalorder %s15, 0
    %p54 = por %p52, %p53
    %s55 = ssub.s32 %s17, %s24
    %p56 = scmp.eq.s32.totalorder %s55, 0
    %s58 = sadd.s32 %s57, 1
    %s59 = scalar_select %p56, %s57, %s58
    %p62 = pneg %p56
    %p63 = scmp.eq.s32.totalorder %s9, 1
    %p64 = por %p62, %p63
    %p65 = scmp.ne.s32.totalorder %s57, %s60
    %p66 = scmp.eq.s32.totalorder %s9, 0
    %p67 = por %p65, %p66
    %p68 = scmp.ne.s32.totalorder %s57, %s60
    %p69 = scmp.eq.s32.totalorder %s14, 1
    %p70 = por %p68, %p69
    %p71 = scmp.ne.s32.totalorder %s60, %s61
    %p72 = scmp.eq.s32.totalorder %s14, 0
    %p73 = por %p71, %p72
    %p74 = scmp.ne.s32.totalorder %s60, %s61
    %p75 = scmp.eq.s32.totalorder %s15, 1
    %p76 = por %p74, %p75
    %p78 = scmp.ne.s32.totalorder %s61, %s77
    %p79 = scmp.eq.s32.totalorder %s15, 0
    %p80 = por %p78, %p79
    %s81 = ssub.s32 %s17, %s24
    %p82 = scmp.eq.s32.totalorder %s81, 0
    %s84 = sadd.s32 %s83, 1
    %s85 = scalar_select %p82, %s83, %s84
    %p88 = pneg %p82
    %p89 = scmp.eq.s32.totalorder %s9, 1
    %p90 = por %p88, %p89
    %p91 = scmp.ne.s32.totalorder %s83, %s86
    %p92 = scmp.eq.s32.totalorder %s9, 0
    %p93 = por %p91, %p92
    %p94 = scmp.ne.s32.totalorder %s83, %s86
    %p95 = scmp.eq.s32.totalorder %s14, 1
    %p96 = por %p94, %p95
    %p97 = scmp.ne.s32.totalorder %s86, %s87
    %p98 = scmp.eq.s32.totalorder %s14, 0
    %p99 = por %p97, %p98
    %p100 = scmp.ne.s32.totalorder %s86, %s87
    %p101 = scmp.eq.s32.totalorder %s15, 1
    %p102 = por %p100, %p101
    %p104 = scmp.ne.s32.totalorder %s87, %s103
    %p105 = scmp.eq.s32.totalorder %s15, 0
    %p106 = por %p104, %p105
    %s107 = ssub.s32 %s16, %s28
    %s108 = ssub.s32 %s17, %s24
    %s109 = sor.u32 %s107, %s108
    %p110 = scmp.eq.s32.totalorder %s109, 0
    %s112 = sadd.s32 %s111, 1
    %s113 = scalar_select %p110, %s111, %s112
    %p116 = pneg %p110
    %p117 = scmp.eq.s32.totalorder %s9, 1
    %p118 = por %p116, %p117
    %p119 = scmp.ne.s32.totalorder %s111, %s114
    %p120 = scmp.eq.s32.totalorder %s9, 0
    %p121 = por %p119, %p120
    %p122 = scmp.ne.s32.totalorder %s111, %s114
    %p123 = scmp.eq.s32.totalorder %s14, 1
    %p124 = por %p122, %p123
    %p125 = scmp.ne.s32.totalorder %s114, %s115
    %p126 = scmp.eq.s32.totalorder %s14, 0
    %p127 = por %p125, %p126
    %p128 = scmp.ne.s32.totalorder %s114, %s115
    %p129 = scmp.eq.s32.totalorder %s15, 1
    %p130 = por %p128, %p129
    %p132 = scmp.ne.s32.totalorder %s115, %s131
    %p133 = scmp.eq.s32.totalorder %s15, 0
    %p134 = por %p132, %p133
    %p135 = scmp.le.s32.totalorder 1, %s9
    %p136 = scmp.lt.s32.totalorder %s9, 3
    %p137 = pnand %p135, %p136
    %p138 = pneg %p137
    // Predicated region
    $region9: #{tpu_custom_call.1} parent=5 // pred_check
      _
    $region10: #{tpu_custom_call.1} parent=5 // pred_check_branch
      %140 = sbr.rel (%p137) target = $region12
    $region11: #{tpu_custom_call.1} parent=5 // pred_region
      %s141 = ssub.s32 %s9, 1
      // Predicated region
      $region13: #{tpu_custom_call.1} parent=11 // pred_check
        %p142 = pneg %p73
      $region14: #{tpu_custom_call.1} parent=11 // pred_check_branch
        %144 = sbr.rel (%p142) target = $region16
      $region15: #{tpu_custom_call.1} parent=11 // pred_region
        %s145 = smul.u32 2, %s19
        %p146 = scmp.lt.s32.totalorder %s145, 1
        %s147 = scalar_select %p146, %s145, 1
        %s148 = smul.addr %s147, 8
        %s149 = scalar_lea.vmem %s1, %s148
        %s150 = smul.u32 2, %s19
      $region16: #{tpu_custom_call.1} parent=11 // pred_fallthru
        _
      // Predicated region
      $region17: #{tpu_custom_call.1} parent=11 // pred_check
        %p151 = pneg %p99
      $region18: #{tpu_custom_call.1} parent=11 // pred_check_branch
        %153 = sbr.rel (%p151) target = $region20
      $region19: #{tpu_custom_call.1} parent=11 // pred_region
        %p154 = scmp.lt.s32.totalorder %s19, 0
        %s155 = scalar_select %p154, %s19, 0
        %s156 = scalar_lea.vmem %s2, %s155
      $region20: #{tpu_custom_call.1} parent=11 // pred_fallthru
        _
    $region12: #{tpu_custom_call.1} parent=5 // pred_fallthru
      _
    %p157 = scmp.lt.s32.totalorder %s9, 2
    // Predicated region
    $region21: #{tpu_custom_call.1} parent=5 // pred_check
      %p158 = pneg %p157
    $region22: #{tpu_custom_call.1} parent=5 // pred_check_branch
      %160 = sbr.rel (%p158) target = $region24
    $region23: #{tpu_custom_call.1} parent=5 // pred_region
      // Predicated region
      $region25: #{tpu_custom_call.1} parent=23 // pred_check
        %p161 = pneg %p41
      $region26: #{tpu_custom_call.1} parent=23 // pred_check_branch
        %163 = sbr.rel (%p161) target = $region28
      $region27: #{tpu_custom_call.1} parent=23 // pred_region
        %s164 = smul.u32 16, %s16
        %p165 = scmp.lt.s32.totalorder %s164, 31
        %s166 = scalar_select %p165, %s164, 31
        %s167 = smul.addr %s166, 8
        %s168 = scalar_lea.vmem %s0, %s167
        %s169 = smul.u32 16, %s16
      $region28: #{tpu_custom_call.1} parent=23 // pred_fallthru
        _
    $region24: #{tpu_custom_call.1} parent=5 // pred_fallthru
      _
    %p170 = scmp.le.s32.totalorder 1, %s9
    %p171 = scmp.lt.s32.totalorder %s9, 3
    %p172 = pnand %p170, %p171
    %p173 = pneg %p172
    // Predicated region
    $region29: #{tpu_custom_call.1} parent=5 // pred_check
      _
    $region30: #{tpu_custom_call.1} parent=5 // pred_check_branch
      %175 = sbr.rel (%p172) target = $region32
    $region31: #{tpu_custom_call.1} parent=5 // pred_region
      %s176 = ssub.s32 %s9, 1
      %s177 = smul.u32 16, %s18
      %p178 = scmp.lt.s32.totalorder %s177, 31
      %s179 = scalar_select %p178, %s177, 31
      %s180 = smul.addr %s179, 8
      %s181 = scalar_lea.vmem %s0, %s180
      %p182 = pneg %p47
      %p183 = pneg %p44
      %s184 = smul.u32 2, %s19
      %p185 = scmp.lt.s32.totalorder %s184, 1
      %s186 = scalar_select %p185, %s184, 1
      %s187 = smul.addr %s186, 8
      %s188 = scalar_lea.vmem %s1, %s187
      %p189 = pneg %p73
      %p190 = pneg %p70
      %p191 = scmp.lt.s32.totalorder %s19, 0
      %s192 = scalar_select %p191, %s19, 0
      %s193 = scalar_lea.vmem %s2, %s192
      %p194 = pneg %p99
      %p195 = pneg %p96
      %p196 = pneg %p127
      %p197 = pneg %p124
      %s198 = smul.u32 16, %s18
      %p199 = scmp.lt.s32.totalorder %s198, 31
      %s200 = scalar_select %p199, %s198, 31
      %p201 = scmp.lt.s32.totalorder %s19, 0
      %s202 = scalar_select %p201, %s19, 0
      %s203 = sadd.s32 %s202, %s200
      %s204 = smul.addr %s203, 8
      %s205 = scalar_lea.vmem %s3, %s204
      %s206 = smul.u32 16, %s18
      %p207 = scmp.lt.s32.totalorder %s206, 31
      %s208 = scalar_select %p207, %s206, 31
      %s209 = smul.addr %s208, 8
      %s210 = scalar_lea.vmem %s0, %s209
      %s211 = smul.u32 16, %s18
      %s212 = smul.u32 2, %s19
      %p213 = scmp.lt.s32.totalorder %s212, 1
      %s214 = scalar_select %p213, %s212, 1
      %s215 = smul.addr %s214, 8
      %s216 = scalar_lea.vmem %s1, %s215
      %s217 = smul.u32 2, %s19
      %p218 = scmp.lt.s32.totalorder %s19, 0
      %s219 = scalar_select %p218, %s19, 0
      %s220 = scalar_lea.vmem %s2, %s219
      %s221 = smul.u32 16, %s18
      %p222 = scmp.lt.s32.totalorder %s221, 31
      %s223 = scalar_select %p222, %s221, 31
      %p224 = scmp.lt.s32.totalorder %s19, 0
      %s225 = scalar_select %p224, %s19, 0
      %s226 = sadd.s32 %s225, %s223
      %s227 = smul.addr %s226, 8
      %s228 = scalar_lea.vmem %s3, %s227
      %s229 = smul.u32 16, %s18
      %v230 = vld [vmem:[%s210] sm:$0xff]
      %v231 = vld [vmem:[%s210 + $0x8] sm:$0xff]
      %v232 = vld [vmem:[%s210 + $0x10] sm:$0xff]
      %v233 = vld [vmem:[%s210 + $0x18] sm:$0xff]
      %v234 = vld [vmem:[%s210 + $0x20] sm:$0xff]
      %v235 = vld [vmem:[%s210 + $0x28] sm:$0xff]
      %v236 = vld [vmem:[%s210 + $0x30] sm:$0xff]
      %v237 = vld [vmem:[%s210 + $0x38] sm:$0xff]
      %v238 = vld [vmem:[%s210 + $0x40] sm:$0xff]
      %v239 = vld [vmem:[%s210 + $0x48] sm:$0xff]
      %v240 = vld [vmem:[%s210 + $0x50] sm:$0xff]
      %v241 = vld [vmem:[%s210 + $0x58] sm:$0xff]
      %v242 = vld [vmem:[%s210 + $0x60] sm:$0xff]
      %v243 = vld [vmem:[%s210 + $0x68] sm:$0xff]
      %v244 = vld [vmem:[%s210 + $0x70] sm:$0xff]
      %v245 = vld [vmem:[%s210 + $0x78] sm:$0xff]
      %v246 = vld [vmem:[%s216] sm:$0xff]
      %v247 = vld [vmem:[%s216 + $0x8] sm:$0x3]
      %v248 = vld [vmem:[%s220] sm:$0x1]
      %v250 = vlaneseq
      %v251 = vshrl.u32 %v250, 7
      %v252 = vsub.s32 0, %v251
      %v253 = vrot.slane %v248, %v252
      %vm255 = vcmask 261120
      %v257 = vsel %vm255, %v230, 0
      %v260 = vsel %vm255, %v231, 0
      %v263 = vsel %vm255, %v232, 0
      %v266 = vsel %vm255, %v233, 0
      %v269 = vsel %vm255, %v234, 0
      %v272 = vsel %vm255, %v235, 0
      %v275 = vsel %vm255, %v236, 0
      %v278 = vsel %vm255, %v237, 0
      %v281 = vsel %vm255, %v238, 0
      %v284 = vsel %vm255, %v239, 0
      %v287 = vsel %vm255, %v240, 0
      %v290 = vsel %vm255, %v241, 0
      %v293 = vsel %vm255, %v242, 0
      %v296 = vsel %vm255, %v243, 0
      %v299 = vsel %vm255, %v244, 0
      %v302 = vsel %vm255, %v245, 0
      %v305 = vsel %vm255, %v246, 0
      %v308 = vsel %vm255, %v247, 0
      %310 = vmatprep.subr.mxu0 0.0
      %311 = vmatpush1.xpose.msra.mxu0 %v305
      %312 = vmatprep.subr.mxu0 0.0
      %313 = vmatpush1.xpose.msra.mxu0 %v308
      %314 = vmatprep.subr.mxu0 0.0
      %315 = vmatpush1.xpose.msra.mxu0 0.0
      %316 = vmatprep.subr.mxu0 0.0
      %317 = vmatpush1.xpose.msra.mxu0 0.0
      %318 = vmatprep.subr.mxu0 0.0
      %319 = vmatpush1.xpose.msra.mxu0 0.0
      %320 = vmatprep.subr.mxu0 0.0
      %321 = vmatpush1.xpose.msra.mxu0 0.0
      %322 = vmatprep.subr.mxu0 0.0
      %323 = vmatpush1.xpose.msra.mxu0 0.0
      %324 = vmatprep.subr.mxu0 0.0
      %325 = vmatpush1.xpose.msra.mxu0 0.0
      %326 = vmatprep.subr.mxu0 0.0
      %327 = vmatpush1.xpose.msra.mxu0 0.0
      %328 = vmatprep.subr.mxu0 0.0
      %329 = vmatpush1.xpose.msra.mxu0 0.0
      %330 = vmatprep.subr.mxu0 0.0
      %331 = vmatpush1.xpose.msra.mxu0 0.0
      %332 = vmatprep.subr.mxu0 0.0
      %333 = vmatpush1.xpose.msra.mxu0 0.0
      %334 = vmatprep.subr.mxu0 0.0
      %335 = vmatpush1.xpose.msra.mxu0 0.0
      %336 = vmatprep.subr.mxu0 0.0
      %337 = vmatpush1.xpose.msra.mxu0 0.0
      %338 = vmatprep.subr.mxu0 0.0
      %339 = vmatpush1.xpose.msra.mxu0 0.0
      %340 = vmatprep.subr.mxu0 0.0
      %341 = vmatpush1.xpose.msra.mxu0 0.0
      %342 = vmatprep.subr.mxu0 0.0
      %343 = vmatpush1.xpose.msra.mxu0 0.0
      %344 = vmatprep.subr.mxu0 0.0
      %345 = vmatpush1.xpose.msra.mxu0 0.0
      %346 = vmatprep.subr.mxu0 0.0
      %347 = vmatpush1.xpose.msra.mxu0 0.0
      %348 = vmatprep.subr.mxu0 0.0
      %349 = vmatpush1.xpose.msra.mxu0 0.0
      %350 = vmatprep.subr.mxu0 0.0
      %351 = vmatpush1.xpose.msra.mxu0 0.0
      %352 = vmatprep.subr.mxu0 0.0
      %353 = vmatpush1.xpose.msra.mxu0 0.0
      %354 = vmatprep.subr.mxu0 0.0
      %355 = vmatpush1.xpose.msra.mxu0 0.0
      %356 = vmatprep.subr.mxu0 0.0
      %357 = vmatpush1.xpose.msra.mxu0 0.0
      %358 = vmatprep.subr.mxu0 0.0
      %359 = vmatpush1.xpose.msra.mxu0 0.0
      %360 = vmatprep.subr.mxu0 0.0
      %361 = vmatpush1.xpose.msra.mxu0 0.0
      %362 = vmatprep.subr.mxu0 0.0
      %363 = vmatpush1.xpose.msra.mxu0 0.0
      %364 = vmatprep.subr.mxu0 0.0
      %365 = vmatpush1.xpose.msra.mxu0 0.0
      %366 = vmatprep.subr.mxu0 0.0
      %367 = vmatpush1.xpose.msra.mxu0 0.0
      %368 = vmatprep.subr.mxu0 0.0
      %369 = vmatpush1.xpose.msra.mxu0 0.0
      %370 = vmatprep.subr.mxu0 0.0
      %371 = vmatpush1.xpose.msra.mxu0 0.0
      %372 = vmatprep.subr.mxu0 0.0
      %373 = vmatpush1.xpose.msra.mxu0 0.0
      %374 = vmatprep.mubr.f32.mxu0 0.0
      %375 = vmatmul.mubr.f32.gmra.mrb[0].mxu0 %v257
      %v376 = vpop.f32.mrb[0].mxu0
      %v377 = vadd.f32 %v253, %v376
      %v378 = vpop.f32.mrb[0].mxu0
      %379 = vmatprep.mubr.f32.mxu0 0.0
      %380 = vmatmul.mubr.f32.gmra.mrb[0].mxu0 %v260
      %v381 = vpop.f32.mrb[0].mxu0
      %v382 = vadd.f32 %v253, %v381
      %v383 = vpop.f32.mrb[0].mxu0
      %384 = vmatprep.mubr.f32.mxu0 0.0
      %385 = vmatmul.mubr.f32.gmra.mrb[0].mxu0 %v263
      %v386 = vpop.f32.mrb[0].mxu0
      %v387 = vadd.f32 %v253, %v386
      %v388 = vpop.f32.mrb[0].mxu0
      %389 = vmatprep.mubr.f32.mxu0 0.0
      %390 = vmatmul.mubr.f32.gmra.mrb[0].mxu0 %v266
      %v391 = vpop.f32.mrb[0].mxu0
      %v392 = vadd.f32 %v253, %v391
      %v393 = vpop.f32.mrb[0].mxu0
      %394 = vmatprep.mubr.f32.mxu0 0.0
      %395 = vmatmul.mubr.f32.gmra.mrb[0].mxu0 %v269
      %v396 = vpop.f32.mrb[0].mxu0
      %v397 = vadd.f32 %v253, %v396
      %v398 = vpop.f32.mrb[0].mxu0
      %399 = vmatprep.mubr.f32.mxu0 0.0
      %400 = vmatmul.mubr.f32.gmra.mrb[0].mxu0 %v272
      %v401 = vpop.f32.mrb[0].mxu0
      %v402 = vadd.f32 %v253, %v401
      %v403 = vpop.f32.mrb[0].mxu0
      %404 = vmatprep.mubr.f32.mxu0 0.0
      %405 = vmatmul.mubr.f32.gmra.mrb[0].mxu0 %v275
      %v406 = vpop.f32.mrb[0].mxu0
      %v407 = vadd.f32 %v253, %v406
      %v408 = vpop.f32.mrb[0].mxu0
      %409 = vmatprep.mubr.f32.mxu0 0.0
      %410 = vmatmul.mubr.f32.gmra.mrb[0].mxu0 %v278
      %v411 = vpop.f32.mrb[0].mxu0
      %v412 = vadd.f32 %v253, %v411
      %v413 = vpop.f32.mrb[0].mxu0
      %414 = vmatprep.mubr.f32.mxu0 0.0
      %415 = vmatmul.mubr.f32.gmra.mrb[0].mxu0 %v281
      %v416 = vpop.f32.mrb[0].mxu0
      %v417 = vadd.f32 %v253, %v416
      %v418 = vpop.f32.mrb[0].mxu0
      %419 = vmatprep.mubr.f32.mxu0 0.0
      %420 = vmatmul.mubr.f32.gmra.mrb[0].mxu0 %v284
      %v421 = vpop.f32.mrb[0].mxu0
      %v422 = vadd.f32 %v253, %v421
      %v423 = vpop.f32.mrb[0].mxu0
      %424 = vmatprep.mubr.f32.mxu0 0.0
      %425 = vmatmul.mubr.f32.gmra.mrb[0].mxu0 %v287
      %v426 = vpop.f32.mrb[0].mxu0
      %v427 = vadd.f32 %v253, %v426
      %v428 = vpop.f32.mrb[0].mxu0
      %429 = vmatprep.mubr.f32.mxu0 0.0
      %430 = vmatmul.mubr.f32.gmra.mrb[0].mxu0 %v290
      %v431 = vpop.f32.mrb[0].mxu0
      %v432 = vadd.f32 %v253, %v431
      %v433 = vpop.f32.mrb[0].mxu0
      %434 = vmatprep.mubr.f32.mxu0 0.0
      %435 = vmatmul.mubr.f32.gmra.mrb[0].mxu0 %v293
      %v436 = vpop.f32.mrb[0].mxu0
      %v437 = vadd.f32 %v253, %v436
      %v438 = vpop.f32.mrb[0].mxu0
      %439 = vmatprep.mubr.f32.mxu0 0.0
      %440 = vmatmul.mubr.f32.gmra.mrb[0].mxu0 %v296
      %v441 = vpop.f32.mrb[0].mxu0
      %v442 = vadd.f32 %v253, %v441
      %v443 = vpop.f32.mrb[0].mxu0
      %444 = vmatprep.mubr.f32.mxu0 0.0
      %445 = vmatmul.mubr.f32.gmra.mrb[0].mxu0 %v299
      %v446 = vpop.f32.mrb[0].mxu0
      %v447 = vadd.f32 %v253, %v446
      %v448 = vpop.f32.mrb[0].mxu0
      %449 = vmatprep.mubr.f32.mxu0 0.0
      %450 = vmatmul.mubr.f32.gmra.mrb[0].mxu0 %v302
      %v451 = vpop.f32.mrb[0].mxu0
      %v452 = vadd.f32 %v253, %v451
      %v453 = vpop.f32.mrb[0].mxu0
      %454 = vdwg.mxu0
      %vm455 = vcmask 80896
      %456 = vst.msk [vmem:[%s228] sm:$0xff] %vm455, %v377
      %457 = vst.msk [vmem:[%s228 + $0x8] sm:$0xff] %vm455, %v382
      %458 = vst.msk [vmem:[%s228 + $0x10] sm:$0xff] %vm455, %v387
      %459 = vst.msk [vmem:[%s228 + $0x18] sm:$0xff] %vm455, %v392
      %460 = vst.msk [vmem:[%s228 + $0x20] sm:$0xff] %vm455, %v397
      %461 = vst.msk [vmem:[%s228 + $0x28] sm:$0xff] %vm455, %v402
      %462 = vst.msk [vmem:[%s228 + $0x30] sm:$0xff] %vm455, %v407
      %463 = vst.msk [vmem:[%s228 + $0x38] sm:$0xff] %vm455, %v412
      %464 = vst.msk [vmem:[%s228 + $0x40] sm:$0xff] %vm455, %v417
      %465 = vst.msk [vmem:[%s228 + $0x48] sm:$0xff] %vm455, %v422
      %466 = vst.msk [vmem:[%s228 + $0x50] sm:$0xff] %vm455, %v427
      %467 = vst.msk [vmem:[%s228 + $0x58] sm:$0xff] %vm455, %v432
      %468 = vst.msk [vmem:[%s228 + $0x60] sm:$0xff] %vm455, %v437
      %469 = vst.msk [vmem:[%s228 + $0x68] sm:$0xff] %vm455, %v442
      %470 = vst.msk [vmem:[%s228 + $0x70] sm:$0xff] %vm455, %v447
      %471 = vst.msk [vmem:[%s228 + $0x78] sm:$0xff] %vm455, %v452
      %s472 = smul.u32 16, %s18
      %p473 = scmp.lt.s32.totalorder %s472, 31
      %s474 = scalar_select %p473, %s472, 31
      %p475 = scmp.lt.s32.totalorder %s19, 0
      %s476 = scalar_select %p475, %s19, 0
      %s477 = sadd.s32 %s476, %s474
      %s478 = smul.addr %s477, 8
      %s479 = scalar_lea.vmem %s3, %s478
      // Predicated region
      $region33: #{tpu_custom_call.1} parent=31 // pred_check
        %p480 = pneg %p124
      $region34: #{tpu_custom_call.1} parent=31 // pred_check_branch
        %482 = sbr.rel (%p480) target = $region36
      $region35: #{tpu_custom_call.1} parent=31 // pred_region
        %s483 = smul.u32 16, %s18
      $region36: #{tpu_custom_call.1} parent=31 // pred_fallthru
        _
    $region32: #{tpu_custom_call.1} parent=5 // pred_fallthru
      _
    %p484 = scmp.le.s32.totalorder 2, %s9
    // Predicated region
    $region37: #{tpu_custom_call.1} parent=5 // pred_check
      %p485 = pneg %p484
    $region38: #{tpu_custom_call.1} parent=5 // pred_check_branch
      %487 = sbr.rel (%p485) target = $region40
    $region39: #{tpu_custom_call.1} parent=5 // pred_region
      %s488 = ssub.s32 %s9, 2
      // Predicated region
      $region41: #{tpu_custom_call.1} parent=39 // pred_check
        %p489 = pneg %p130
      $region42: #{tpu_custom_call.1} parent=39 // pred_check_branch
        %491 = sbr.rel (%p489) target = $region44
      $region43: #{tpu_custom_call.1} parent=39 // pred_region
        %s492 = smul.u32 16, %s20
        %p493 = scmp.lt.s32.totalorder %s492, 31
        %s494 = scalar_select %p493, %s492, 31
        %p495 = scmp.lt.s32.totalorder %s21, 0
        %s496 = scalar_select %p495, %s21, 0
        %s497 = sadd.s32 %s496, %s494
        %s498 = smul.addr %s497, 8
        %s499 = scalar_lea.vmem %s3, %s498
      $region44: #{tpu_custom_call.1} parent=39 // pred_fallthru
        _
    $region40: #{tpu_custom_call.1} parent=5 // pred_fallthru
      _
  $region6: #{tpu_custom_call.1} parent=0 // loop_footer
    %s13 = sadd.s32 1, %s9
  $region7: #{tpu_custom_call.1} parent=0 // loop_footer_branch
    %8 = sbr.rel target = $region3
  $region8: #{tpu_custom_call.1} parent=0 // loop_exit
    _

</llo_original>
